<compile_context>
chip_gen: v5e
topology: v5e:2x2
jax: 0.10.0
libtpu: 0.0.40
codegen_flags: <defaults>
</compile_context>

<pallas_src>
import functools

import jax
import jax.numpy as jnp
from jax import lax
from jax.experimental import pallas as pl
from jax.experimental.pallas import tpu as pltpu


# ----------------------------------------------------------------------------
# Helpers
# ----------------------------------------------------------------------------
def _round_up(x, m):
    return ((x + m - 1) // m) * m


def _pick_lane_tile(dim, pref):
    """Largest divisor of `dim` <= pref that is a multiple of 256 (full MXU
    width on v6e/v7x), else 128; fall back to the full dim (always legal)."""
    if dim <= pref:
        return dim
    for align in (256, 128):
        t = (pref // align) * align
        while t >= align:
            if dim % t == 0:
                return t
            t -= align
    return dim


# ----------------------------------------------------------------------------
# Linear (x @ w + b) kernels
# ----------------------------------------------------------------------------
def _linear_kernel(x_ref, w_ref, b_ref, o_ref):
    # K collapsed into one tile: single MXU pass, bias fused in f32 epilogue.
    acc = jnp.dot(x_ref[...], w_ref[...], preferred_element_type=jnp.float32)
    o_ref[...] = (acc + b_ref[...].astype(jnp.float32)).astype(o_ref.dtype)


def _linear_acc_kernel(x_ref, w_ref, b_ref, o_ref, acc_ref):
    # K-tiled fallback for very large K (not used at DeiT sizes).
    @pl.when(pl.program_id(2) == 0)
    def _():
        acc_ref[...] = jnp.zeros_like(acc_ref)

    acc_ref[...] += jnp.dot(x_ref[...], w_ref[...],
                            preferred_element_type=jnp.float32)

    @pl.when(pl.program_id(2) == pl.num_programs(2) - 1)
    def _():
        o_ref[...] = (acc_ref[...] + b_ref[...].astype(jnp.float32)).astype(o_ref.dtype)


def linear_pallas(x, w, b, out_dtype=None, *, tm_pref=256, tn_pref=1152, tk_max=2048):
    """y = x @ w + b.  x:(M,K) w:(K,NO) b:(NO,).  bf16 operands, f32 accumulate."""
    M, K = x.shape
    K2, NO = w.shape
    assert K == K2
    out_dtype = out_dtype or x.dtype

    # Pad M up to a clean tile multiple (avoids the full-M-tile fallback for
    # awkward M = B*197); pad rows are zeros and stripped at the end.
    tm = tm_pref if M >= tm_pref else _round_up(M, 8)
    Mp = _round_up(M, tm)
    if Mp != M:
        x = jnp.pad(x, ((0, Mp - M), (0, 0)))

    tn = _pick_lane_tile(NO, tn_pref)
    b2 = b.reshape(1, NO).astype(jnp.float32)

    cost = pl.CostEstimate(
        flops=2 * Mp * K * NO,
        transcendentals=0,
        bytes_accessed=int(Mp * K * x.dtype.itemsize + K * NO * w.dtype.itemsize
                           + Mp * NO * jnp.dtype(out_dtype).itemsize + NO * 4),
    )

    if K <= tk_max:
        y = pl.pallas_call(
            _linear_kernel,
            out_shape=jax.ShapeDtypeStruct((Mp, NO), out_dtype),
            grid=(Mp // tm, NO // tn),
            in_specs=[
                pl.BlockSpec((tm, K), lambda i, j: (i, 0)),
                pl.BlockSpec((K, tn), lambda i, j: (0, j)),
                pl.BlockSpec((1, tn), lambda i, j: (0, j)),
            ],
            out_specs=pl.BlockSpec((tm, tn), lambda i, j: (i, j)),
            compiler_params=pltpu.CompilerParams(
                dimension_semantics=("parallel", "parallel"),
                vmem_limit_bytes=32 * 1024 * 1024,
            ),
            cost_estimate=cost,
        )(x, w, b2)
    else:
        tk = _pick_lane_tile(K, 512)
        y = pl.pallas_call(
            _linear_acc_kernel,
            out_shape=jax.ShapeDtypeStruct((Mp, NO), out_dtype),
            grid=(Mp // tm, NO // tn, K // tk),
            in_specs=[
                pl.BlockSpec((tm, tk), lambda i, j, k: (i, k)),
                pl.BlockSpec((tk, tn), lambda i, j, k: (k, j)),
                pl.BlockSpec((1, tn), lambda i, j, k: (0, j)),
            ],
            out_specs=pl.BlockSpec((tm, tn), lambda i, j, k: (i, j)),
            scratch_shapes=[pltpu.VMEM((tm, tn), jnp.float32)],
            compiler_params=pltpu.CompilerParams(
                dimension_semantics=("parallel", "parallel", "arbitrary"),
                vmem_limit_bytes=32 * 1024 * 1024,
            ),
            cost_estimate=cost,
        )(x, w, b2)

    return y[:M] if Mp != M else y


# ----------------------------------------------------------------------------
# Attention kernels
# ----------------------------------------------------------------------------
def _one_head(q, k, v):
    """q,k,v: (N, D), q already scaled.  MXU operands keep input dtype (bf16),
    softmax statistics in f32, denominator via EUP reciprocal."""
    s = lax.dot_general(q, k, dimension_numbers=(((1,), (1,)), ((), ())),
                        preferred_element_type=jnp.float32)        # q @ k^T, f32
    s = s - jnp.max(s, axis=-1, keepdims=True)
    p = jnp.exp(s)
    inv = pl.reciprocal(jnp.sum(p, axis=-1, keepdims=True), approx=True)
    o = jnp.dot(p.astype(v.dtype), v, preferred_element_type=jnp.float32)
    return o * inv                                                  # (N, D) f32


def _attn_group_kernel(q_ref, k_ref, v_ref, o_ref, *, heads_per_block, head_dim, scale):
    # q/k/v refs: (1, N, G*D) 128-lane-aligned slabs for G heads of one image.
    # Per-head results land in the VMEM output block; Pallas writes the whole
    # lane-dense block to HBM once per grid step.
    D = head_dim
    q_all = q_ref[0] * scale          # scale folded into q (N*G*D mults, not N*N)
    k_all = k_ref[0]
    v_all = v_ref[0]
    for g in range(heads_per_block):
        o = _one_head(q_all[:, g * D:(g + 1) * D],
                      k_all[:, g * D:(g + 1) * D],
                      v_all[:, g * D:(g + 1) * D])
        o_ref[0, :, g * D:(g + 1) * D] = o.astype(o_ref.dtype)


def _attn_slab_kernel(qkv_ref, o_ref, *, num_heads, head_dim, scale):
    # Fallback when no head grouping gives a 128-multiple lane width
    # (e.g. C=192, H=3): whole (1, N, 3C) slab per batch element.
    H, D = num_heads, head_dim
    C = H * D
    q_all = qkv_ref[0, :, :C] * scale
    k_all = qkv_ref[0, :, C:2 * C]
    v_all = qkv_ref[0, :, 2 * C:]
    for h in range(H):
        o = _one_head(q_all[:, h * D:(h + 1) * D],
                      k_all[:, h * D:(h + 1) * D],
                      v_all[:, h * D:(h + 1) * D])
        o_ref[0, :, h * D:(h + 1) * D] = o.astype(o_ref.dtype)


def mhsa_pallas(qkv, num_heads, head_dim, scale):
    """qkv: (B, N, 3C) straight from the qkv projection (q|k|v column slabs,
    head-major inside each).  Returns (B, N, C); no activation transposes."""
    B, N, C3 = qkv.shape
    C = C3 // 3
    H, D = num_heads, head_dim

    # Smallest head group G (G | H) whose lane width G*D is a 128-multiple.
    group = next((g for g in range(1, H + 1)
                  if H % g == 0 and (g * D) % 128 == 0), None)

    cost = pl.CostEstimate(
        flops=4 * B * H * N * N * D,
        transcendentals=B * H * N * N,
        bytes_accessed=int(4 * B * N * C * qkv.dtype.itemsize),
    )

    if group is not None:
        W = group * D
        n_groups = C // W
        kernel = functools.partial(_attn_group_kernel, heads_per_block=group,
                                   head_dim=D, scale=scale)
        return pl.pallas_call(
            kernel,
            out_shape=jax.ShapeDtypeStruct((B, N, C), qkv.dtype),
            grid=(B, n_groups),
            in_specs=[
                pl.BlockSpec((1, N, W), lambda b, g: (b, 0, g)),
                pl.BlockSpec((1, N, W), lambda b, g: (b, 0, n_groups + g)),
                pl.BlockSpec((1, N, W), lambda b, g: (b, 0, 2 * n_groups + g)),
            ],
            out_specs=pl.BlockSpec((1, N, W), lambda b, g: (b, 0, g)),
            compiler_params=pltpu.CompilerParams(
                dimension_semantics=("parallel", "parallel"),
                vmem_limit_bytes=32 * 1024 * 1024,
            ),
            cost_estimate=cost,
        )(qkv, qkv, qkv)

    kernel = functools.partial(_attn_slab_kernel, num_heads=H, head_dim=D, scale=scale)
    return pl.pallas_call(
        kernel,
        out_shape=jax.ShapeDtypeStruct((B, N, C), qkv.dtype),
        grid=(B,),
        in_specs=[pl.BlockSpec((1, N, C3), lambda b: (b, 0, 0))],
        out_specs=pl.BlockSpec((1, N, C), lambda b: (b, 0, 0)),
        compiler_params=pltpu.CompilerParams(
            dimension_semantics=("parallel",),
            vmem_limit_bytes=32 * 1024 * 1024,
        ),
        cost_estimate=cost,
    )(qkv)


# ----------------------------------------------------------------------------
# Forward pass (Pallas-backed equivalent of Attention.forward)
# ----------------------------------------------------------------------------
def attention_forward(x, w_qkv, b_qkv, w_proj, b_proj, num_heads):
    """x:(B,N,C); w_qkv:(C,3C) b_qkv:(3C,); w_proj:(C,C) b_proj:(C,)."""
    B, N, C = x.shape
    H = num_heads
    D = C // H
    scale = D ** -0.5
    orig_dtype = x.dtype

    # bf16 MXU operands (f32 accumulation in the kernels); the qkv activation
    # slab also stays bf16 between the two pallas_calls to halve HBM traffic.
    xb = x.astype(jnp.bfloat16).reshape(B * N, C)
    qkv = linear_pallas(xb, w_qkv.astype(jnp.bfloat16), b_qkv,
                        out_dtype=jnp.bfloat16)          # (B*N, 3C) bf16
    qkv = qkv.reshape(B, N, 3 * C)                       # metadata-only reshape

    out = mhsa_pallas(qkv, H, D, scale)                  # (B, N, C) bf16, dense layout

    y = linear_pallas(out.reshape(B * N, C), w_proj.astype(jnp.bfloat16), b_proj,
                      out_dtype=orig_dtype)
    return y.reshape(B, N, C)
    # TODO(synk): attn_drop / proj_drop are identity at p=0.0 (inference).


# ----------------------------------------------------------------------------
# Pure-JAX f32 reference (sanity check)
# ----------------------------------------------------------------------------
def attention_reference(x, w_qkv, b_qkv, w_proj, b_proj, num_heads):
    B, N, C = x.shape
    H = num_heads
    D = C // H
    scale = D ** -0.5
    qkv = x.reshape(B * N, C) @ w_qkv + b_qkv
    qkv = qkv.reshape(B, N, 3, H, D).transpose(2, 0, 3, 1, 4)
    q, k, v = qkv[0] * scale, qkv[1], qkv[2]
    attn = jnp.einsum("bhnd,bhmd->bhnm", q, k)
    attn = jax.nn.softmax(attn, axis=-1)
    o = jnp.einsum("bhnm,bhmd->bhnd", attn, v)
    o = o.transpose(0, 2, 1, 3).reshape(B * N, C)
    return (o @ w_proj + b_proj).reshape(B, N, C)


# ----------------------------------------------------------------------------
# Main
# ----------------------------------------------------------------------------
if __name__ == "__main__":
    # Small shapes consistent with the module: dim=C=128, num_heads=8 (D=16).
    B, N, C = 2, 16, 128
    num_heads = 8

    key = jax.random.PRNGKey(0)
    kx, kw1, kw2, kb2 = jax.random.split(key, 4)

    x = jax.random.normal(kx, (B, N, C), dtype=jnp.float32)

    bound = 1.0 / (C ** 0.5)
    w_qkv = jax.random.uniform(kw1, (C, 3 * C), jnp.float32, -bound, bound)
    b_qkv = jnp.zeros((3 * C,), jnp.float32)   # qkv_bias=False -> no bias
    w_proj = jax.random.uniform(kw2, (C, C), jnp.float32, -bound, bound)
    b_proj = jax.random.uniform(kb2, (C,), jnp.float32, -bound, bound)

    out = attention_forward(x, w_qkv, b_qkv, w_proj, b_proj, num_heads)
    out = jax.block_until_ready(out)

    ref = attention_reference(x, w_qkv, b_qkv, w_proj, b_proj, num_heads)
    assert out.shape == (B, N, C)
    # Tolerance accounts for bf16 MXU operands and the approx EUP reciprocal.
    assert jnp.allclose(out, ref, atol=5e-2, rtol=5e-2), "mismatch vs reference"

    print("KERNEL_OK")
</pallas_src>

<mosaic_0001>
module attributes {stable_mosaic.version = 11 : i64} {
  func.func @_linear_kernel(%arg0: i32, %arg1: i32, %arg2: memref<32x128xbf16, #tpu.memory_space<vmem>>, %arg3: memref<128x384xbf16, #tpu.memory_space<vmem>>, %arg4: memref<1x384xf32, #tpu.memory_space<vmem>>, %arg5: memref<32x384xbf16, #tpu.memory_space<vmem>>) attributes {dimension_semantics = [#tpu.dimension_semantics<parallel>, #tpu.dimension_semantics<parallel>], iteration_bounds = array<i64: 1, 1>, scalar_prefetch = 0 : i64, scratch_operands = 0 : i64, tpu.core_type = #tpu.core_type<tc>, window_params = [{transform_indices = @transform_0, window_bounds = array<i64: 32, 128>}, {transform_indices = @transform_1, window_bounds = array<i64: 128, 384>}, {transform_indices = @transform_2, window_bounds = array<i64: 1, 384>}, {transform_indices = @transform_3, window_bounds = array<i64: 32, 384>}]} {
    %c0 = arith.constant 0 : index
    %c0_0 = arith.constant 0 : index
    %0 = vector.load %arg2[%c0, %c0_0] : memref<32x128xbf16, #tpu.memory_space<vmem>>, vector<32x128xbf16>
    %c0_1 = arith.constant 0 : index
    %c0_2 = arith.constant 0 : index
    %1 = vector.load %arg3[%c0_1, %c0_2] : memref<128x384xbf16, #tpu.memory_space<vmem>>, vector<128x384xbf16>
    %cst = arith.constant dense<0.000000e+00> : vector<32x384xf32>
    %2 = tpu.matmul %0, %1, %cst {dimension_numbers = #tpu.dot_dimension_numbers<[1], [0], [0], [1], [0, 0, 1, 1], [], []>} : vector<32x128xbf16>, vector<128x384xbf16>, vector<32x384xf32> -> vector<32x384xf32>
    %c0_3 = arith.constant 0 : index
    %c0_4 = arith.constant 0 : index
    %3 = vector.load %arg4[%c0_3, %c0_4] : memref<1x384xf32, #tpu.memory_space<vmem>>, vector<1x384xf32>
    %4 = vector.broadcast %3 : vector<1x384xf32> to vector<32x384xf32>
    %5 = arith.addf %2, %4 : vector<32x384xf32>
    %6 = arith.truncf %5 : vector<32x384xf32> to vector<32x384xbf16>
    %c0_5 = arith.constant 0 : index
    %c0_6 = arith.constant 0 : index
    %7 = vector.load %arg5[%c0_5, %c0_6] : memref<32x384xbf16, #tpu.memory_space<vmem>>, vector<32x384xbf16>
    tpu.vector_store %arg5[%c0_5, %c0_6], %6 {strides = array<i32>} : memref<32x384xbf16, #tpu.memory_space<vmem>>, vector<32x384xbf16>,
    return
  }
  func.func @transform_0(%arg0: i32, %arg1: i32) -> (i32, i32) {
    %c0_i32 = arith.constant 0 : i32
    %c0_i32_0 = arith.constant 0 : i32
    return %arg0, %c0_i32 : i32, i32
  }
  func.func @transform_1(%arg0: i32, %arg1: i32) -> (i32, i32) {
    %c0_i32 = arith.constant 0 : i32
    %c0_i32_0 = arith.constant 0 : i32
    return %c0_i32, %arg1 : i32, i32
  }
  func.func @transform_2(%arg0: i32, %arg1: i32) -> (i32, i32) {
    %c0_i32 = arith.constant 0 : i32
    %c0_i32_0 = arith.constant 0 : i32
    return %c0_i32, %arg1 : i32, i32
  }
  func.func @transform_3(%arg0: i32, %arg1: i32) -> (i32, i32) {
    %c0_i32 = arith.constant 0 : i32
    return %arg0, %arg1 : i32, i32
  }
}

</mosaic_0001>

<llo_original>
// kernel: tpu_custom_call.1
$region0: #{tpu_custom_call.1}
  #allocation0 [shape = 'u32[]', space=smem, size = 0x4, offset = 0x4, fixed_abs, tag = 'smem constant byte address 0x4 - core index']
  #allocation1 [shape = 'u32[72,128]{1,0:T(1,128)}', space=vmem, size = 0x9000, scoped, tag = 'internal scratch']
  %s0 = inlined_call_operand.hbm [shape: bf16[32,128], index: 0, kind: input, shape index: {}]
  %s1 = inlined_call_operand.hbm [shape: bf16[128,384], index: 1, kind: input, shape index: {}]
  %s2 = inlined_call_operand.hbm [shape: f32[1,384], index: 2, kind: input, shape index: {}]
  %s3 = inlined_call_operand.hbm [shape: bf16[32,384], index: 3, kind: output, shape index: {}]
  %s4 = sld [smem:[#allocation0]]
  $region34: #{tpu_custom_call.1} parent=0
    _
  %s6 = ssub.s32 1, %s4
  %s7 = scalar_select 0, %s6, %s4
  $region1: #{tpu_custom_call.1} parent=0
    #allocation2 [shape = 'u8[8192]{0}', space=vmem, size = 0x2000, scoped, tag = 'input window, operand 0, single buffered']
    #allocation3 [shape = 's32[1]{0}', space=sflag, size = 0x4, scoped, tag = 'scoped memory for tpu_custom_call.1']
    #allocation4 [shape = 's32[1]{0}', space=sflag, size = 0x4, scoped, tag = 'scoped memory for tpu_custom_call.1']
    #allocation5 [shape = 'u8[98304]{0}', space=vmem, size = 0x18000, scoped, tag = 'input window, operand 1, single buffered']
    #allocation6 [shape = 's32[1]{0}', space=sflag, size = 0x4, scoped, tag = 'scoped memory for tpu_custom_call.1']
    #allocation7 [shape = 'u8[1536]{0}', space=vmem, size = 0x800, scoped, tag = 'input window, operand 2, single buffered']
    #allocation8 [shape = 'u8[24576]{0}', space=vmem, size = 0x6000, scoped, tag = 'output window, operand 0, single buffered']
    %8 = vsyncpa [#allocation3], 0
    %9 = vsyncpa [#allocation6], 0
    %10 = vsyncpa [#allocation4], 0
    // Predicated region
    $region2: #{tpu_custom_call.1} parent=1 // pred_check
      _
    $region3: #{tpu_custom_call.1} parent=1 // pred_check_branch
      %12 = sbr.rel (0) target = $region5
    $region4: #{tpu_custom_call.1} parent=1 // pred_region
      %14 = vsyncadd [#allocation3], 0
      %s15 = sshll.u32 %s0, 4
      %s16 = int_to_ptr.hbm [resolvable:$true] %s15
      %s17 = sshll.u32 [#allocation2], 4
      %s18 = int_to_ptr.vmem [resolvable:$true] %s17
      %23 = dma.hbm_to_vmem [thread:$0]  %s16, 256, %s18, [#allocation3], 64, 64, 4
    $region5: #{tpu_custom_call.1} parent=1 // pred_fallthru
      _
    // Predicated region
    $region6: #{tpu_custom_call.1} parent=1 // pred_check
      _
    $region7: #{tpu_custom_call.1} parent=1 // pred_check_branch
      %25 = sbr.rel (0) target = $region9
    $region8: #{tpu_custom_call.1} parent=1 // pred_region
      %27 = vsyncadd [#allocation6], 0
      %s28 = sshll.u32 %s1, 4
      %s29 = int_to_ptr.hbm [resolvable:$true] %s28
      %s30 = sshll.u32 [#allocation5], 4
      %s31 = int_to_ptr.vmem [resolvable:$true] %s30
      %36 = dma.hbm_to_vmem [thread:$0]  %s29, 3072, %s31, [#allocation6], 192, 192, 12
    $region9: #{tpu_custom_call.1} parent=1 // pred_fallthru
      _
    // Predicated region
    $region10: #{tpu_custom_call.1} parent=1 // pred_check
      _
    $region11: #{tpu_custom_call.1} parent=1 // pred_check_branch
      %38 = sbr.rel (0) target = $region13
    $region12: #{tpu_custom_call.1} parent=1 // pred_region
      %40 = vsyncadd [#allocation6], 0
      %s42 = sshll.u32 %s2, 4
      %s43 = int_to_ptr.hbm [resolvable:$true] %s42
      %s44 = sshll.u32 [#allocation7], 4
      %s45 = int_to_ptr.vmem [resolvable:$true] %s44
      %47 = dma.hbm_to_vmem [thread:$0]  %s43, 48, %s45, [#allocation6]
    $region13: #{tpu_custom_call.1} parent=1 // pred_fallthru
      _
    // Predicated region
    $region14: #{tpu_custom_call.1} parent=1 // pred_check
      _
    $region15: #{tpu_custom_call.1} parent=1 // pred_check_branch
      %49 = sbr.rel (0) target = $region17
    $region16: #{tpu_custom_call.1} parent=1 // pred_region
      %51 = dma.done [#allocation3], 256
    $region17: #{tpu_custom_call.1} parent=1 // pred_fallthru
      _
    // Predicated region
    $region18: #{tpu_custom_call.1} parent=1 // pred_check
      _
    $region19: #{tpu_custom_call.1} parent=1 // pred_check_branch
      %53 = sbr.rel (0) target = $region21
    $region20: #{tpu_custom_call.1} parent=1 // pred_region
      %55 = dma.done [#allocation6], 3072
    $region21: #{tpu_custom_call.1} parent=1 // pred_fallthru
      _
    // Predicated region
    $region22: #{tpu_custom_call.1} parent=1 // pred_check
      _
    $region23: #{tpu_custom_call.1} parent=1 // pred_check_branch
      %57 = sbr.rel (0) target = $region25
    $region24: #{tpu_custom_call.1} parent=1 // pred_region
      %59 = dma.done [#allocation6], 48
    $region25: #{tpu_custom_call.1} parent=1 // pred_fallthru
      _
    %v60 = vld [vmem:[#allocation2] sm:$0xf]
    %v61 = vld [vmem:[#allocation2 + $0x4] sm:$0xf]
    %v62 = vld [vmem:[#allocation2 + $0x8] sm:$0xf]
    %v63 = vld [vmem:[#allocation2 + $0xc] sm:$0xf]
    %v64 = vld [vmem:[#allocation5] sm:$0xff]
    %v65 = vld [vmem:[#allocation5 + $0x8] sm:$0xf]
    %v66 = vld [vmem:[#allocation5 + $0xc] sm:$0xff]
    %v67 = vld [vmem:[#allocation5 + $0x14] sm:$0xf]
    %v68 = vld [vmem:[#allocation5 + $0x18] sm:$0xff]
    %v69 = vld [vmem:[#allocation5 + $0x20] sm:$0xf]
    %v70 = vld [vmem:[#allocation5 + $0x24] sm:$0xff]
    %v71 = vld [vmem:[#allocation5 + $0x2c] sm:$0xf]
    %v72 = vld [vmem:[#allocation5 + $0x30] sm:$0xff]
    %v73 = vld [vmem:[#allocation5 + $0x38] sm:$0xf]
    %v74 = vld [vmem:[#allocation5 + $0x3c] sm:$0xff]
    %v75 = vld [vmem:[#allocation5 + $0x44] sm:$0xf]
    %v76 = vld [vmem:[#allocation5 + $0x48] sm:$0xff]
    %v77 = vld [vmem:[#allocation5 + $0x50] sm:$0xf]
    %v78 = vld [vmem:[#allocation5 + $0x54] sm:$0xff]
    %v79 = vld [vmem:[#allocation5 + $0x5c] sm:$0xf]
    %v80 = vld [vmem:[#allocation5 + $0x60] sm:$0xff]
    %v81 = vld [vmem:[#allocation5 + $0x68] sm:$0xf]
    %v82 = vld [vmem:[#allocation5 + $0x6c] sm:$0xff]
    %v83 = vld [vmem:[#allocation5 + $0x74] sm:$0xf]
    %v84 = vld [vmem:[#allocation5 + $0x78] sm:$0xff]
    %v85 = vld [vmem:[#allocation5 + $0x80] sm:$0xf]
    %v86 = vld [vmem:[#allocation5 + $0x84] sm:$0xff]
    %v87 = vld [vmem:[#allocation5 + $0x8c] sm:$0xf]
    %v88 = vld [vmem:[#allocation5 + $0x90] sm:$0xff]
    %v89 = vld [vmem:[#allocation5 + $0x98] sm:$0xf]
    %v90 = vld [vmem:[#allocation5 + $0x9c] sm:$0xff]
    %v91 = vld [vmem:[#allocation5 + $0xa4] sm:$0xf]
    %v92 = vld [vmem:[#allocation5 + $0xa8] sm:$0xff]
    %v93 = vld [vmem:[#allocation5 + $0xb0] sm:$0xf]
    %v94 = vld [vmem:[#allocation5 + $0xb4] sm:$0xff]
    %v95 = vld [vmem:[#allocation5 + $0xbc] sm:$0xf]
    %v96 = vld [vmem:[#allocation7] sm:$0x7]
    %v98 = vperm.slane %v96, 0
    %v99 = vperm.slane %v96, 1
    %v100 = vperm.slane %v96, 2
    %v108 = vunpack.c.l.b16 %v60
    %v109 = vunpack.c.l.b16 %v61
    %v110 = vunpack.c.l.b16 %v62
    %v111 = vunpack.c.l.b16 %v63
    %v112 = vpack.c.b16 %v109, %v108
    %v113 = vpack.c.b16 %v111, %v110
    %v148 = vunpack.c.l.b16 %v64
    %v149 = vunpack.c.h.b16 %v64
    %v150 = vunpack.c.l.b16 %v65
    %v151 = vunpack.c.l.b16 %v66
    %v152 = vunpack.c.h.b16 %v66
    %v153 = vunpack.c.l.b16 %v67
    %v154 = vunpack.c.l.b16 %v68
    %v155 = vunpack.c.h.b16 %v68
    %v156 = vunpack.c.l.b16 %v69
    %v157 = vunpack.c.l.b16 %v70
    %v158 = vunpack.c.h.b16 %v70
    %v159 = vunpack.c.l.b16 %v71
    %v160 = vunpack.c.l.b16 %v72
    %v161 = vunpack.c.h.b16 %v72
    %v162 = vunpack.c.l.b16 %v73
    %v163 = vunpack.c.l.b16 %v74
    %v164 = vunpack.c.h.b16 %v74
    %v165 = vunpack.c.l.b16 %v75
    %v166 = vunpack.c.l.b16 %v76
    %v167 = vunpack.c.h.b16 %v76
    %v168 = vunpack.c.l.b16 %v77
    %v169 = vunpack.c.l.b16 %v78
    %v170 = vunpack.c.h.b16 %v78
    %v171 = vunpack.c.l.b16 %v79
    %v172 = vunpack.c.l.b16 %v80
    %v173 = vunpack.c.h.b16 %v80
    %v174 = vunpack.c.l.b16 %v81
    %v175 = vunpack.c.l.b16 %v82
    %v176 = vunpack.c.h.b16 %v82
    %v177 = vunpack.c.l.b16 %v83
    %v178 = vunpack.c.l.b16 %v84
    %v179 = vunpack.c.h.b16 %v84
    %v180 = vunpack.c.l.b16 %v85
    %v181 = vunpack.c.l.b16 %v86
    %v182 = vunpack.c.h.b16 %v86
    %v183 = vunpack.c.l.b16 %v87
    %v184 = vunpack.c.l.b16 %v88
    %v185 = vunpack.c.h.b16 %v88
    %v186 = vunpack.c.l.b16 %v89
    %v187 = vunpack.c.l.b16 %v90
    %v188 = vunpack.c.h.b16 %v90
    %v189 = vunpack.c.l.b16 %v91
    %v190 = vunpack.c.l.b16 %v92
    %v191 = vunpack.c.h.b16 %v92
    %v192 = vunpack.c.l.b16 %v93
    %v193 = vunpack.c.l.b16 %v94
    %v194 = vunpack.c.h.b16 %v94
    %v195 = vunpack.c.l.b16 %v95
    %v196 = vpack.c.b16 %v151, %v148
    %v197 = vpack.c.b16 %v152, %v149
    %v198 = vpack.c.b16 %v153, %v150
    %v199 = vpack.c.b16 %v157, %v154
    %v200 = vpack.c.b16 %v158, %v155
    %v201 = vpack.c.b16 %v159, %v156
    %v202 = vpack.c.b16 %v163, %v160
    %v203 = vpack.c.b16 %v164, %v161
    %v204 = vpack.c.b16 %v165, %v162
    %v205 = vpack.c.b16 %v169, %v166
    %v206 = vpack.c.b16 %v170, %v167
    %v207 = vpack.c.b16 %v171, %v168
    %v208 = vpack.c.b16 %v175, %v172
    %v209 = vpack.c.b16 %v176, %v173
    %v210 = vpack.c.b16 %v177, %v174
    %v211 = vpack.c.b16 %v181, %v178
    %v212 = vpack.c.b16 %v182, %v179
    %v213 = vpack.c.b16 %v183, %v180
    %v214 = vpack.c.b16 %v187, %v184
    %v215 = vpack.c.b16 %v188, %v185
    %v216 = vpack.c.b16 %v189, %v186
    %v217 = vpack.c.b16 %v193, %v190
    %v218 = vpack.c.b16 %v194, %v191
    %v219 = vpack.c.b16 %v195, %v192
    %244 = vmatpush.bf16.msra.mxu0 %v217
    %245 = vmatpush.bf16.msra.mxu0 %v214
    %246 = vmatpush.bf16.msra.mxu0 %v211
    %247 = vmatpush.bf16.msra.mxu0 %v208
    %248 = vmatpush.bf16.msra.mxu0 %v205
    %249 = vmatpush.bf16.msra.mxu0 %v202
    %250 = vmatpush.bf16.msra.mxu0 %v199
    %251 = vmatpush.bf16.msra.mxu0 %v196
    %252 = vmatmul.bf16.gmra.mxu0 %v112
    %v253 = vpop.f32.mrf.mxu0
    %v254 = vadd.f32 %v98, %v253
    %v255 = vpop.f32.mrf.mxu0
    %v256 = vadd.f32 %v98, %v255
    %257 = vmatmul.bf16.gmra.mxu0 %v113
    %v258 = vpop.f32.mrf.mxu0
    %v259 = vadd.f32 %v98, %v258
    %v260 = vpop.f32.mrf.mxu0
    %v261 = vadd.f32 %v98, %v260
    %262 = vdwg.mxu0
    %263 = vmatpush.bf16.msra.mxu0 %v218
    %264 = vmatpush.bf16.msra.mxu0 %v215
    %265 = vmatpush.bf16.msra.mxu0 %v212
    %266 = vmatpush.bf16.msra.mxu0 %v209
    %267 = vmatpush.bf16.msra.mxu0 %v206
    %268 = vmatpush.bf16.msra.mxu0 %v203
    %269 = vmatpush.bf16.msra.mxu0 %v200
    %270 = vmatpush.bf16.msra.mxu0 %v197
    %271 = vmatmul.bf16.gmra.mxu0 %v112
    %v272 = vpop.f32.mrf.mxu0
    %v273 = vadd.f32 %v99, %v272
    %v274 = vpop.f32.mrf.mxu0
    %v275 = vadd.f32 %v99, %v274
    %276 = vmatmul.bf16.gmra.mxu0 %v113
    %v277 = vpop.f32.mrf.mxu0
    %v278 = vadd.f32 %v99, %v277
    %v279 = vpop.f32.mrf.mxu0
    %v280 = vadd.f32 %v99, %v279
    %281 = vdwg.mxu0
    %282 = vmatpush.bf16.msra.mxu0 %v219
    %283 = vmatpush.bf16.msra.mxu0 %v216
    %284 = vmatpush.bf16.msra.mxu0 %v213
    %285 = vmatpush.bf16.msra.mxu0 %v210
    %286 = vmatpush.bf16.msra.mxu0 %v207
    %287 = vmatpush.bf16.msra.mxu0 %v204
    %288 = vmatpush.bf16.msra.mxu0 %v201
    %289 = vmatpush.bf16.msra.mxu0 %v198
    %290 = vmatmul.bf16.gmra.mxu0 %v112
    %v291 = vpop.f32.mrf.mxu0
    %v292 = vadd.f32 %v100, %v291
    %v293 = vpop.f32.mrf.mxu0
    %v294 = vadd.f32 %v100, %v293
    %295 = vmatmul.bf16.gmra.mxu0 %v113
    %v296 = vpop.f32.mrf.mxu0
    %v297 = vadd.f32 %v100, %v296
    %v298 = vpop.f32.mrf.mxu0
    %v299 = vadd.f32 %v100, %v298
    %300 = vdwg.mxu0
    %v301 = vpack.c.bf16 %v273, %v254
    %v302 = vpack.c.bf16 %v292, %v292
    %v303 = vpack.c.bf16 %v275, %v256
    %v304 = vpack.c.bf16 %v294, %v294
    %v305 = vpack.c.bf16 %v278, %v259
    %v306 = vpack.c.bf16 %v297, %v297
    %v307 = vpack.c.bf16 %v280, %v261
    %v308 = vpack.c.bf16 %v299, %v299
    %309 = vst [vmem:[#allocation8] sm:$0xff] %v301
    %310 = vst [vmem:[#allocation8 + $0x8] sm:$0xf] %v302
    %311 = vst [vmem:[#allocation8 + $0xc] sm:$0xff] %v303
    %312 = vst [vmem:[#allocation8 + $0x14] sm:$0xf] %v304
    %313 = vst [vmem:[#allocation8 + $0x18] sm:$0xff] %v305
    %314 = vst [vmem:[#allocation8 + $0x20] sm:$0xf] %v306
    %315 = vst [vmem:[#allocation8 + $0x24] sm:$0xff] %v307
    %316 = vst [vmem:[#allocation8 + $0x2c] sm:$0xf] %v308
    // Predicated region
    $region26: #{tpu_custom_call.1} parent=1 // pred_check
      _
    $region27: #{tpu_custom_call.1} parent=1 // pred_check_branch
      %318 = sbr.rel (0) target = $region29
    $region28: #{tpu_custom_call.1} parent=1 // pred_region
      %320 = vsyncadd [#allocation4], 0
      %s321 = sshll.u32 [#allocation8], 4
      %s322 = int_to_ptr.vmem [resolvable:$true] %s321
      %s323 = sshll.u32 %s3, 4
      %s324 = int_to_ptr.hbm [resolvable:$true] %s323
      %329 = dma.vmem_to_hbm [thread:$0]  %s322, 768, %s324, [#allocation4], 192, 192, 12
    $region29: #{tpu_custom_call.1} parent=1 // pred_fallthru
      _
    // Predicated region
    $region30: #{tpu_custom_call.1} parent=1 // pred_check
      _
    $region31: #{tpu_custom_call.1} parent=1 // pred_check_branch
      %331 = sbr.rel (0) target = $region33
    $region32: #{tpu_custom_call.1} parent=1 // pred_region
      %333 = dma.done [#allocation4], 768
    $region33: #{tpu_custom_call.1} parent=1 // pred_fallthru
      _
    %334 = vsyncpa [#allocation3], 1
    %335 = vsyncpa [#allocation6], 1
    %336 = vsyncpa [#allocation4], 1

</llo_original>
